<compile_context>
chip_gen: v7x
topology: tpu7x:2x2x1
jax: 0.10.0
libtpu: 0.0.40
codegen_flags: <defaults>
</compile_context>

<pallas_src>
import math
from functools import partial

import jax
import jax.numpy as jnp
from jax.experimental import pallas as pl
from jax.experimental.pallas import tpu as pltpu


def _flash_attn_kernel(tgt_ref, mem_ref, wq_ref, wkv_ref, out_ref,
                       q_sc, m_sc, l_sc, acc_sc,
                       *, nb, lq, tk, d_model, dkp, mxu_dtype):
    """One (batch-block, Lk-block) step of online-softmax attention.

    Block shapes:
      tgt_ref : (nb, lq, d_model)     mem_ref : (nb, tk, d_model)
      wq_ref  : (d_model, dkp)        wkv_ref : (d_model, 2*dkp)   [Wk | Wv], padded
      out_ref : (nb, lq, dkp)
    Scratch (persist across the Lk grid axis):
      q_sc (nb,lq,dkp) cached Q; m_sc/l_sc (nb,lq,1) running max/denom;
      acc_sc (nb,lq,dkp) unnormalized output accumulator.
    """
    k_idx = pl.program_id(1)

    @pl.when(k_idx == 0)
    def _init():
        # Q projection once per batch block; 1/sqrt(dk) already folded into Wq.
        tgt2 = tgt_ref[...].reshape(nb * lq, d_model)
        q2 = jnp.dot(tgt2.astype(mxu_dtype), wq_ref[...].astype(mxu_dtype),
                     preferred_element_type=jnp.float32)          # (nb*lq, dkp)
        q_sc[...] = q2.reshape(nb, lq, dkp)
        m_sc[...] = jnp.full(m_sc.shape, -jnp.inf, dtype=m_sc.dtype)
        l_sc[...] = jnp.zeros(l_sc.shape, dtype=l_sc.dtype)
        acc_sc[...] = jnp.zeros(acc_sc.shape, dtype=acc_sc.dtype)

    # Fused K/V projection for this Lk block: one matmul, N = 2*dkp (lane-dense).
    mem2 = mem_ref[...].reshape(nb * tk, d_model)
    kv = jnp.dot(mem2.astype(mxu_dtype), wkv_ref[...].astype(mxu_dtype),
                 preferred_element_type=jnp.float32)              # (nb*tk, 2*dkp)
    k = kv[:, :dkp].reshape(nb, tk, dkp)        # lane-tile-aligned slices
    v = kv[:, dkp:].reshape(nb, tk, dkp)

    # Scores: contract the (padded) dk axis of Q and K directly -- no k.T transpose.
    # Zero-padded columns contribute nothing, so scores are exact.
    q = q_sc[...]
    s = jnp.einsum('bqd,bkd->bqk',
                   q.astype(mxu_dtype), k.astype(mxu_dtype),
                   preferred_element_type=jnp.float32)            # (nb, lq, tk)

    # Online (flash) softmax update -- all softmax math stays in f32.
    m_prev = m_sc[...]
    m_new = jnp.maximum(m_prev, jnp.max(s, axis=-1, keepdims=True))
    alpha = jnp.exp(m_prev - m_new)                               # rescale factor
    p = jnp.exp(s - m_new)                                        # (nb, lq, tk)
    l_sc[...] = alpha * l_sc[...] + jnp.sum(p, axis=-1, keepdims=True)
    acc_sc[...] = alpha * acc_sc[...] + jnp.einsum(
        'bqk,bkd->bqd', p.astype(mxu_dtype), v.astype(mxu_dtype),
        preferred_element_type=jnp.float32)
    m_sc[...] = m_new

    @pl.when(k_idx == pl.num_programs(1) - 1)
    def _finalize():
        # Single normalization of the accumulator; approx reciprocal -> EUP slot.
        inv_l = pl.reciprocal(l_sc[...], approx=True)
        out_ref[...] = (acc_sc[...] * inv_l).astype(out_ref.dtype)


def _choose_k_block(lk, cap=512):
    """Lk tile: whole axis when small, else the largest sublane-aligned divisor <= cap."""
    if lk <= cap:
        return lk
    for d in range(cap, 7, -1):
        if lk % d == 0 and d % 8 == 0:
            return d
    return lk  # fall back to the whole axis


def _choose_batch_block(b, lq, lk, target_m=256):
    """Fold batch elements per grid step to fill the MXU M dim at small shapes,
    but keep >= 2 steps on the parallel batch axis when B allows (v7x: 2 TCs).
    Folding requires sublane-aligned Lq/Lk so in-kernel reshapes are layout no-ops."""
    if lq % 8 != 0 or lk % 8 != 0:
        return 1
    best = 1
    for d in range(1, b + 1):
        if b % d == 0 and d * lq <= target_m:
            best = d
    if b >= 2 and b // best < 2:
        for d in range(best - 1, 0, -1):
            if b % d == 0 and b // d >= 2:
                return d
        return 1
    return best


def single_head_att(tgt, memory, wq_t, wk_t, wv_t, *, use_bf16_mxu=False):
    """tgt: (B, Lq, D), memory: (B, Lk, D), w*_t: (D, dk) -> (B, Lq, dk).

    w*_t are the nn.Linear weights pre-transposed so the kernel computes x @ W.
    use_bf16_mxu: cast MXU operands to bf16 (f32 accumulate) -- faster on v6e/v7x,
    slightly different numerics; default False keeps exact f32 module semantics.
    """
    B, Lq, D = tgt.shape
    Bk, Lk, Dm = memory.shape
    assert Bk == B and Dm == D
    dk = wq_t.shape[1]
    dkp = ((dk + 127) // 128) * 128                # pad dk -> lane-dense 128 multiple
    dtype = tgt.dtype

    # Fold softmax scale into Wq; zero-pad all projections to dkp columns so every
    # matmul / store is lane-dense. Padded columns stay exactly zero end-to-end.
    scale = 1.0 / math.sqrt(dk)
    wq_p = jnp.zeros((D, dkp), dtype).at[:, :dk].set(wq_t.astype(dtype) * scale)
    wk_p = jnp.zeros((D, dkp), dtype).at[:, :dk].set(wk_t.astype(dtype))
    wv_p = jnp.zeros((D, dkp), dtype).at[:, :dk].set(wv_t.astype(dtype))
    wkv_p = jnp.concatenate([wk_p, wv_p], axis=1)  # (D, 2*dkp) fused K|V weights

    nb = _choose_batch_block(B, Lq, Lk)
    tk = _choose_k_block(Lk)
    num_b = B // nb
    num_k = Lk // tk

    mxu_dtype = jnp.bfloat16 if use_bf16_mxu else dtype

    kernel = partial(_flash_attn_kernel, nb=nb, lq=Lq, tk=tk, d_model=D,
                     dkp=dkp, mxu_dtype=mxu_dtype)

    # VMEM budget (double-buffered inputs/outputs + scratch), with headroom, clamped
    # so it also fits v7x's 64 MiB/TC.
    bpe = 4
    est = (2 * (nb * Lq * D + nb * tk * D + D * dkp + D * 2 * dkp + nb * Lq * dkp)
           + 2 * nb * Lq * dkp + 2 * nb * Lq * 128) * bpe
    vmem_limit = int(min(max(4 * est, 32 * 1024 * 1024), 48 * 1024 * 1024))

    out_padded = pl.pallas_call(
        kernel,
        out_shape=jax.ShapeDtypeStruct((B, Lq, dkp), dtype),
        grid_spec=pltpu.PrefetchScalarGridSpec(
            num_scalar_prefetch=0,
            grid=(num_b, num_k),                       # batch blocks x Lk blocks
            in_specs=[
                pl.BlockSpec((nb, Lq, D), lambda b, k: (b, 0, 0)),    # tgt
                pl.BlockSpec((nb, tk, D), lambda b, k: (b, k, 0)),    # memory
                pl.BlockSpec((D, dkp), lambda b, k: (0, 0)),          # Wq (scaled, padded)
                pl.BlockSpec((D, 2 * dkp), lambda b, k: (0, 0)),      # [Wk|Wv] fused
            ],
            out_specs=pl.BlockSpec((nb, Lq, dkp), lambda b, k: (b, 0, 0)),
            scratch_shapes=[
                pltpu.VMEM((nb, Lq, dkp), jnp.float32),   # cached Q
                pltpu.VMEM((nb, Lq, 1), jnp.float32),     # running max
                pltpu.VMEM((nb, Lq, 1), jnp.float32),     # running denom
                pltpu.VMEM((nb, Lq, dkp), jnp.float32),   # output accumulator
            ],
        ),
        compiler_params=pltpu.CompilerParams(
            dimension_semantics=("parallel", "arbitrary"),
            vmem_limit_bytes=vmem_limit,
        ),
    )(tgt, memory, wq_p, wkv_p)

    # Drop the lane-padding columns (exact zeros).
    return out_padded[..., :dk]


def _reference(tgt, memory, wq_t, wk_t, wv_t, dk):
    q = tgt @ wq_t
    k = memory @ wk_t
    v = memory @ wv_t
    a = jnp.einsum("bqd,bkd->bqk", q, k) / math.sqrt(dk)
    a = jax.nn.softmax(a, axis=-1)
    return jnp.einsum("bqk,bkd->bqd", a, v)


if __name__ == "__main__":
    # Small, module-consistent shapes
    B, Lq, Lk, D_MODEL, DK = 2, 8, 8, 32, 32

    key = jax.random.PRNGKey(0)
    k1, k2, k3, k4, k5 = jax.random.split(key, 5)

    tgt = jax.random.normal(k1, (B, Lq, D_MODEL), dtype=jnp.float32)
    memory = jax.random.normal(k2, (B, Lk, D_MODEL), dtype=jnp.float32)

    # nn.Linear(d_model, dk) weights are (dk, d_model); pass them transposed
    # (d_model, dk) so the kernel computes x @ W  (== x @ W_linear.T).
    wq = jax.random.normal(k3, (DK, D_MODEL), dtype=jnp.float32) * (1.0 / math.sqrt(D_MODEL))
    wk = jax.random.normal(k4, (DK, D_MODEL), dtype=jnp.float32) * (1.0 / math.sqrt(D_MODEL))
    wv = jax.random.normal(k5, (DK, D_MODEL), dtype=jnp.float32) * (1.0 / math.sqrt(D_MODEL))
    wq_t, wk_t, wv_t = wq.T, wk.T, wv.T

    out = single_head_att(tgt, memory, wq_t, wk_t, wv_t)
    out = jax.block_until_ready(out)

    ref = _reference(tgt, memory, wq_t, wk_t, wv_t, DK)
    assert out.shape == (B, Lq, DK)
    # Tolerance accounts for the approx (EUP) reciprocal in the softmax normalization.
    assert jnp.allclose(out, ref, atol=2e-3, rtol=2e-3), "mismatch vs reference"

    # TODO(synk): tgt_mask / key-padding-mask path and dropout>0 are not implemented
    # (the reference forward config uses tgt_mask=None, dropout=0.0).

    print("KERNEL_OK")
</pallas_src>

<mosaic_0001>
module attributes {stable_mosaic.version = 11 : i64} {
  func.func @_flash_attn_kernel(%arg0: i32, %arg1: i32, %arg2: memref<1x8x32xf32, #tpu.memory_space<vmem>>, %arg3: memref<1x8x32xf32, #tpu.memory_space<vmem>>, %arg4: memref<32x128xf32, #tpu.memory_space<vmem>>, %arg5: memref<32x256xf32, #tpu.memory_space<vmem>>, %arg6: memref<1x8x128xf32, #tpu.memory_space<vmem>>, %arg7: memref<1x8x128xf32, #tpu.memory_space<vmem>>, %arg8: memref<1x8x1xf32, #tpu.memory_space<vmem>>, %arg9: memref<1x8x1xf32, #tpu.memory_space<vmem>>, %arg10: memref<1x8x128xf32, #tpu.memory_space<vmem>>) attributes {dimension_semantics = [#tpu.dimension_semantics<parallel>, #tpu.dimension_semantics<arbitrary>], iteration_bounds = array<i64: 2, 1>, scalar_prefetch = 0 : i64, scratch_operands = 4 : i64, tpu.core_type = #tpu.core_type<tc>, window_params = [{transform_indices = @transform_0, window_bounds = array<i64: 1, 8, 32>}, {transform_indices = @transform_1, window_bounds = array<i64: 1, 8, 32>}, {pipeline_mode = #tpu.pipeline_mode<synchronous>, transform_indices = @transform_2, window_bounds = array<i64: 32, 128>}, {pipeline_mode = #tpu.pipeline_mode<synchronous>, transform_indices = @transform_3, window_bounds = array<i64: 32, 256>}, {transform_indices = @transform_4, window_bounds = array<i64: 1, 8, 128>}]} {
    %c0_i32 = arith.constant 0 : i32
    %0 = arith.cmpi eq, %arg1, %c0_i32 : i32
    %1 = arith.extui %0 : i1 to i32
    %c0_i32_0 = arith.constant 0 : i32
    %2 = arith.cmpi ne, %1, %c0_i32_0 : i32
    scf.if %2 {
      %c0_32 = arith.constant 0 : index
      %c0_33 = arith.constant 0 : index
      %c0_34 = arith.constant 0 : index
      %38 = vector.load %arg2[%c0_32, %c0_33, %c0_34] : memref<1x8x32xf32, #tpu.memory_space<vmem>>, vector<1x8x32xf32>
      %39 = vector.shape_cast %38 : vector<1x8x32xf32> to vector<8x32xf32>
      %c0_35 = arith.constant 0 : index
      %c0_36 = arith.constant 0 : index
      %40 = vector.load %arg4[%c0_35, %c0_36] : memref<32x128xf32, #tpu.memory_space<vmem>>, vector<32x128xf32>
      %cst_37 = arith.constant dense<0.000000e+00> : vector<8x128xf32>
      %41 = tpu.matmul %39, %40, %cst_37 {dimension_numbers = #tpu.dot_dimension_numbers<[1], [0], [0], [1], [0, 0, 1, 1], [], []>} : vector<8x32xf32>, vector<32x128xf32>, vector<8x128xf32> -> vector<8x128xf32>
      %42 = vector.shape_cast %41 : vector<8x128xf32> to vector<1x8x128xf32>
      %c0_38 = arith.constant 0 : index
      %c0_39 = arith.constant 0 : index
      %c0_40 = arith.constant 0 : index
      %43 = vector.load %arg7[%c0_38, %c0_39, %c0_40] : memref<1x8x128xf32, #tpu.memory_space<vmem>>, vector<1x8x128xf32>
      tpu.vector_store %arg7[%c0_38, %c0_39, %c0_40], %42 {strides = array<i32>} : memref<1x8x128xf32, #tpu.memory_space<vmem>>, vector<1x8x128xf32>,
      %cst_41 = arith.constant 0xFF800000 : f32
      %44 = vector.broadcast %cst_41 : f32 to vector<1x8x1xf32>
      %c0_42 = arith.constant 0 : index
      %c0_43 = arith.constant 0 : index
      %c0_44 = arith.constant 0 : index
      %45 = vector.load %arg8[%c0_42, %c0_43, %c0_44] : memref<1x8x1xf32, #tpu.memory_space<vmem>>, vector<1x8x1xf32>
      tpu.vector_store %arg8[%c0_42, %c0_43, %c0_44], %44 {strides = array<i32>} : memref<1x8x1xf32, #tpu.memory_space<vmem>>, vector<1x8x1xf32>,
      %cst_45 = arith.constant 0.000000e+00 : f32
      %46 = vector.broadcast %cst_45 : f32 to vector<1x8x1xf32>
      %c0_46 = arith.constant 0 : index
      %c0_47 = arith.constant 0 : index
      %c0_48 = arith.constant 0 : index
      %47 = vector.load %arg9[%c0_46, %c0_47, %c0_48] : memref<1x8x1xf32, #tpu.memory_space<vmem>>, vector<1x8x1xf32>
      tpu.vector_store %arg9[%c0_46, %c0_47, %c0_48], %46 {strides = array<i32>} : memref<1x8x1xf32, #tpu.memory_space<vmem>>, vector<1x8x1xf32>,
      %cst_49 = arith.constant 0.000000e+00 : f32
      %48 = vector.broadcast %cst_49 : f32 to vector<1x8x128xf32>
      %c0_50 = arith.constant 0 : index
      %c0_51 = arith.constant 0 : index
      %c0_52 = arith.constant 0 : index
      %49 = vector.load %arg10[%c0_50, %c0_51, %c0_52] : memref<1x8x128xf32, #tpu.memory_space<vmem>>, vector<1x8x128xf32>
      tpu.vector_store %arg10[%c0_50, %c0_51, %c0_52], %48 {strides = array<i32>} : memref<1x8x128xf32, #tpu.memory_space<vmem>>, vector<1x8x128xf32>,
    } else {
    }
    %c0 = arith.constant 0 : index
    %c0_1 = arith.constant 0 : index
    %c0_2 = arith.constant 0 : index
    %3 = vector.load %arg3[%c0, %c0_1, %c0_2] : memref<1x8x32xf32, #tpu.memory_space<vmem>>, vector<1x8x32xf32>
    %4 = vector.shape_cast %3 : vector<1x8x32xf32> to vector<8x32xf32>
    %c0_3 = arith.constant 0 : index
    %c0_4 = arith.constant 0 : index
    %5 = vector.load %arg5[%c0_3, %c0_4] : memref<32x256xf32, #tpu.memory_space<vmem>>, vector<32x256xf32>
    %cst = arith.constant dense<0.000000e+00> : vector<8x256xf32>
    %6 = tpu.matmul %4, %5, %cst {dimension_numbers = #tpu.dot_dimension_numbers<[1], [0], [0], [1], [0, 0, 1, 1], [], []>} : vector<8x32xf32>, vector<32x256xf32>, vector<8x256xf32> -> vector<8x256xf32>
    %7 = vector.extract_strided_slice %6 {offsets = [0, 0], sizes = [8, 128], strides = [1, 1]} : vector<8x256xf32> to vector<8x128xf32>
    %8 = vector.shape_cast %7 : vector<8x128xf32> to vector<1x8x128xf32>
    %9 = vector.extract_strided_slice %6 {offsets = [0, 128], sizes = [8, 128], strides = [1, 1]} : vector<8x256xf32> to vector<8x128xf32>
    %10 = vector.shape_cast %9 : vector<8x128xf32> to vector<1x8x128xf32>
    %c0_5 = arith.constant 0 : index
    %c0_6 = arith.constant 0 : index
    %c0_7 = arith.constant 0 : index
    %11 = vector.load %arg7[%c0_5, %c0_6, %c0_7] : memref<1x8x128xf32, #tpu.memory_space<vmem>>, vector<1x8x128xf32>
    "tpu.trace_start"() <{level = 10 : i32, message = "bqd,bkd->bqk"}> : () -> ()
    %cst_8 = arith.constant dense<0.000000e+00> : vector<1x8x8xf32>
    %12 = tpu.matmul %11, %8, %cst_8 {dimension_numbers = #tpu.dot_dimension_numbers<[2], [2], [1], [1], [0, 0, 0, 1, 1, 1], [0], [0]>} : vector<1x8x128xf32>, vector<1x8x128xf32>, vector<1x8x8xf32> -> vector<1x8x8xf32>
    "tpu.trace_stop"() : () -> ()
    %c0_9 = arith.constant 0 : index
    %c0_10 = arith.constant 0 : index
    %c0_11 = arith.constant 0 : index
    %13 = vector.load %arg8[%c0_9, %c0_10, %c0_11] : memref<1x8x1xf32, #tpu.memory_space<vmem>>, vector<1x8x1xf32>
    %cst_12 = arith.constant dense<0xFF800000> : vector<1x8xf32>
    %14 = vector.multi_reduction <maximumf>, %12, %cst_12 [2] : vector<1x8x8xf32> to vector<1x8xf32>
    %15 = vector.shape_cast %14 : vector<1x8xf32> to vector<1x8x1xf32>
    %16 = arith.maximumf %13, %15 : vector<1x8x1xf32>
    %17 = arith.subf %13, %16 : vector<1x8x1xf32>
    %18 = math.exp %17 : vector<1x8x1xf32>
    %19 = vector.broadcast %16 : vector<1x8x1xf32> to vector<1x8x8xf32>
    %20 = arith.subf %12, %19 : vector<1x8x8xf32>
    %21 = math.exp %20 : vector<1x8x8xf32>
    %c0_13 = arith.constant 0 : index
    %c0_14 = arith.constant 0 : index
    %c0_15 = arith.constant 0 : index
    %22 = vector.load %arg9[%c0_13, %c0_14, %c0_15] : memref<1x8x1xf32, #tpu.memory_space<vmem>>, vector<1x8x1xf32>
    %23 = arith.mulf %18, %22 : vector<1x8x1xf32>
    %cst_16 = arith.constant dense<0.000000e+00> : vector<1x8xf32>
    %24 = vector.multi_reduction <add>, %21, %cst_16 [2] : vector<1x8x8xf32> to vector<1x8xf32>
    %25 = vector.shape_cast %24 : vector<1x8xf32> to vector<1x8x1xf32>
    %26 = arith.addf %23, %25 : vector<1x8x1xf32>
    %c0_17 = arith.constant 0 : index
    %c0_18 = arith.constant 0 : index
    %c0_19 = arith.constant 0 : index
    %27 = vector.load %arg9[%c0_17, %c0_18, %c0_19] : memref<1x8x1xf32, #tpu.memory_space<vmem>>, vector<1x8x1xf32>
    tpu.vector_store %arg9[%c0_17, %c0_18, %c0_19], %26 {strides = array<i32>} : memref<1x8x1xf32, #tpu.memory_space<vmem>>, vector<1x8x1xf32>,
    %c0_20 = arith.constant 0 : index
    %c0_21 = arith.constant 0 : index
    %c0_22 = arith.constant 0 : index
    %28 = vector.load %arg10[%c0_20, %c0_21, %c0_22] : memref<1x8x128xf32, #tpu.memory_space<vmem>>, vector<1x8x128xf32>
    %29 = vector.broadcast %18 : vector<1x8x1xf32> to vector<1x8x128xf32>
    %30 = arith.mulf %29, %28 : vector<1x8x128xf32>
    "tpu.trace_start"() <{level = 10 : i32, message = "bqk,bkd->bqd"}> : () -> ()
    %cst_23 = arith.constant dense<0.000000e+00> : vector<1x8x128xf32>
    %31 = tpu.matmul %21, %10, %cst_23 {dimension_numbers = #tpu.dot_dimension_numbers<[2], [1], [1], [2], [0, 0, 0, 1, 1, 2], [0], [0]>} : vector<1x8x8xf32>, vector<1x8x128xf32>, vector<1x8x128xf32> -> vector<1x8x128xf32>
    "tpu.trace_stop"() : () -> ()
    %32 = arith.addf %30, %31 : vector<1x8x128xf32>
    %c0_24 = arith.constant 0 : index
    %c0_25 = arith.constant 0 : index
    %c0_26 = arith.constant 0 : index
    %33 = vector.load %arg10[%c0_24, %c0_25, %c0_26] : memref<1x8x128xf32, #tpu.memory_space<vmem>>, vector<1x8x128xf32>
    tpu.vector_store %arg10[%c0_24, %c0_25, %c0_26], %32 {strides = array<i32>} : memref<1x8x128xf32, #tpu.memory_space<vmem>>, vector<1x8x128xf32>,
    %c0_27 = arith.constant 0 : index
    %c0_28 = arith.constant 0 : index
    %c0_29 = arith.constant 0 : index
    %34 = vector.load %arg8[%c0_27, %c0_28, %c0_29] : memref<1x8x1xf32, #tpu.memory_space<vmem>>, vector<1x8x1xf32>
    tpu.vector_store %arg8[%c0_27, %c0_28, %c0_29], %16 {strides = array<i32>} : memref<1x8x1xf32, #tpu.memory_space<vmem>>, vector<1x8x1xf32>,
    %c0_i32_30 = arith.constant 0 : i32
    %35 = arith.cmpi eq, %arg1, %c0_i32_30 : i32
    %36 = arith.extui %35 : i1 to i32
    %c0_i32_31 = arith.constant 0 : i32
    %37 = arith.cmpi ne, %36, %c0_i32_31 : i32
    scf.if %37 {
      %c0_32 = arith.constant 0 : index
      %c0_33 = arith.constant 0 : index
      %c0_34 = arith.constant 0 : index
      %38 = vector.load %arg9[%c0_32, %c0_33, %c0_34] : memref<1x8x1xf32, #tpu.memory_space<vmem>>, vector<1x8x1xf32>
      %39 = tpu.reciprocal %38 {approx = true} : vector<1x8x1xf32> -> vector<1x8x1xf32>
      %c0_35 = arith.constant 0 : index
      %c0_36 = arith.constant 0 : index
      %c0_37 = arith.constant 0 : index
      %40 = vector.load %arg10[%c0_35, %c0_36, %c0_37] : memref<1x8x128xf32, #tpu.memory_space<vmem>>, vector<1x8x128xf32>
      %41 = vector.broadcast %39 : vector<1x8x1xf32> to vector<1x8x128xf32>
      %42 = arith.mulf %40, %41 : vector<1x8x128xf32>
      %c0_38 = arith.constant 0 : index
      %c0_39 = arith.constant 0 : index
      %c0_40 = arith.constant 0 : index
      %43 = vector.load %arg6[%c0_38, %c0_39, %c0_40] : memref<1x8x128xf32, #tpu.memory_space<vmem>>, vector<1x8x128xf32>
      tpu.vector_store %arg6[%c0_38, %c0_39, %c0_40], %42 {strides = array<i32>} : memref<1x8x128xf32, #tpu.memory_space<vmem>>, vector<1x8x128xf32>,
    } else {
    }
    return
  }
  func.func @transform_0(%arg0: i32, %arg1: i32) -> (i32, i32, i32) {
    %c0_i32 = arith.constant 0 : i32
    %c0_i32_0 = arith.constant 0 : i32
    %c0_i32_1 = arith.constant 0 : i32
    return %arg0, %c0_i32, %c0_i32_0 : i32, i32, i32
  }
  func.func @transform_1(%arg0: i32, %arg1: i32) -> (i32, i32, i32) {
    %c0_i32 = arith.constant 0 : i32
    %c0_i32_0 = arith.constant 0 : i32
    return %arg0, %arg1, %c0_i32 : i32, i32, i32
  }
  func.func @transform_2(%arg0: i32, %arg1: i32) -> (i32, i32) {
    %c0_i32 = arith.constant 0 : i32
    %c0_i32_0 = arith.constant 0 : i32
    %c0_i32_1 = arith.constant 0 : i32
    return %c0_i32, %c0_i32_0 : i32, i32
  }
  func.func @transform_3(%arg0: i32, %arg1: i32) -> (i32, i32) {
    %c0_i32 = arith.constant 0 : i32
    %c0_i32_0 = arith.constant 0 : i32
    %c0_i32_1 = arith.constant 0 : i32
    return %c0_i32, %c0_i32_0 : i32, i32
  }
  func.func @transform_4(%arg0: i32, %arg1: i32) -> (i32, i32, i32) {
    %c0_i32 = arith.constant 0 : i32
    %c0_i32_0 = arith.constant 0 : i32
    %c0_i32_1 = arith.constant 0 : i32
    return %arg0, %c0_i32, %c0_i32_0 : i32, i32, i32
  }
}

</mosaic_0001>

<llo_original>
// kernel: tpu_custom_call.1
$region0: #{tpu_custom_call.1}
  #allocation0 [shape = 'u32[]', space=smem, size = 0x4, offset = 0x4, fixed_abs, tag = 'smem constant byte address 0x4 - core index']
  #allocation1 [shape = 'u32[144,128]{1,0:T(1,128)}', space=vmem, size = 0x12000, scoped, tag = 'internal scratch']
  #allocation2 [shape = 'f32[1,8,128]{2,1,0:T(8,128)}', space=vmem, size = 0x1000, scoped, tag = 'scratch operand']
  #allocation3 [shape = 'f32[1,8,1]{2,1,0:T(8,128)}', space=vmem, size = 0x1000, scoped, tag = 'scratch operand']
  #allocation4 [shape = 'f32[1,8,1]{2,1,0:T(8,128)}', space=vmem, size = 0x1000, scoped, tag = 'scratch operand']
  #allocation5 [shape = 'f32[1,8,128]{2,1,0:T(8,128)}', space=vmem, size = 0x1000, scoped, tag = 'scratch operand']
  %s0 = inlined_call_operand.hbm [shape: f32[2,8,32], index: 0, kind: input, shape index: {}]
  %s1 = inlined_call_operand.hbm [shape: f32[2,8,32], index: 1, kind: input, shape index: {}]
  %s2 = inlined_call_operand.hbm [shape: f32[32,128], index: 2, kind: input, shape index: {}]
  %s3 = inlined_call_operand.hbm [shape: f32[32,256], index: 3, kind: input, shape index: {}]
  %s4 = inlined_call_operand.hbm [shape: f32[2,8,128], index: 4, kind: output, shape index: {}]
  %s5 = sld [smem:[#allocation0]]
  $region73: #{tpu_custom_call.1} parent=0
    _
  %s7 = ssub.s32 1, %s5
  %s8 = scalar_select 0, %s7, %s5
  $region1: #{tpu_custom_call.1} parent=0
    #allocation6 [shape = 'u8[8192]{0}', space=vmem, size = 0x2000, scoped, tag = 'input window, operand 0']
    #allocation7 [shape = 's32[2]{0}', space=sflag, size = 0x8, scoped, tag = 'scoped memory for tpu_custom_call.1']
    #allocation8 [shape = 's32[2]{0}', space=sflag, size = 0x8, scoped, tag = 'scoped memory for tpu_custom_call.1']
    #allocation9 [shape = 'u8[8192]{0}', space=vmem, size = 0x2000, scoped, tag = 'input window, operand 1']
    #allocation10 [shape = 's32[2]{0}', space=sflag, size = 0x8, scoped, tag = 'scoped memory for tpu_custom_call.1']
    #allocation11 [shape = 'u8[16384]{0}', space=vmem, size = 0x4000, scoped, tag = 'input window, operand 2, single buffered']
    #allocation12 [shape = 'u8[32768]{0}', space=vmem, size = 0x8000, scoped, tag = 'input window, operand 3, single buffered']
    #allocation13 [shape = 's32[1]{0}', space=sflag, size = 0x4, scoped, tag = 'scoped memory for tpu_custom_call.1']
    #allocation14 [shape = 'u8[8192]{0}', space=vmem, size = 0x2000, scoped, tag = 'output window, operand 0']
    %9 = vsyncpa [#allocation7], 0
    %s10 = scalar_lea.sflag [#allocation7], 1
    %11 = vsyncpa %s10, 0
    %12 = vsyncpa [#allocation10], 0
    %s13 = scalar_lea.sflag [#allocation10], 1
    %14 = vsyncpa %s13, 0
    %15 = vsyncpa [#allocation13], 0
    %16 = vsyncpa [#allocation8], 0
    %s17 = scalar_lea.sflag [#allocation8], 1
    %18 = vsyncpa %s17, 0
    loop: start=0, step=1, limit=4
    $region2: #{tpu_custom_call.1} parent=1 // loop_pre_header
      _
    $region3: #{tpu_custom_call.1} parent=1 // loop_header
      %s20 = sphi 0, %s24
      %p21 = scmp.ge.s32.totalorder %s20, 4
      %s27 = sphi 0, %s39
      %s28 = sphi 0, %s35
      %s29 = sphi 0, %s27
      %s30 = sphi 0, %s28
      %s31 = sphi 0, %s29
      %s32 = sphi 0, %s30
      %s42 = sphi 0, %s44
      %s45 = sphi 0, %s42
      %s46 = sphi 0, %s45
      %s62 = sphi 0, %s46
      %s70 = sphi 0, %s72
      %s73 = sphi 0, %s70
      %s74 = sphi 0, %s73
      %s90 = sphi 0, %s74
      %s94 = sphi 0, %s94
      %s96 = sphi 0, %s94
      %s97 = sphi 0, %s96
      %s111 = sphi 0, %s97
      %s115 = sphi 0, %s115
      %s117 = sphi 0, %s115
      %s118 = sphi 0, %s117
      %s132 = sphi 0, %s118
      %s138 = sphi 0, %s140
      %s141 = sphi 0, %s138
      %s142 = sphi 0, %s141
      %s158 = sphi 0, %s142
    $region4: #{tpu_custom_call.1} parent=1 // loop_header_branch
      %23 = sbr.rel (%p21) target = $region8
    $region5: #{tpu_custom_call.1} parent=1 // loop_body
      %s25 = ssub.s32 %s20, 1
      %s26 = ssub.s32 %s20, 2
      %s33 = sadd.s32 1, %s28
      %p34 = scmp.ge.s32.totalorder %s33, 1
      %s35 = scalar_select %p34, 0, %s33
      %s36 = sadd.s32 1, %s27
      %s37 = scalar_select %p34, %s36, %s27
      %p38 = scmp.ge.s32.totalorder %s37, 2
      %s39 = scalar_select %p38, 0, %s37
      %s40 = ssub.s32 %s27, %s39
      %p41 = scmp.eq.s32.totalorder %s40, 0
      %s43 = sadd.s32 %s42, 1
      %s44 = scalar_select %p41, %s42, %s43
      %p47 = pneg %p41
      %p48 = scmp.eq.s32.totalorder %s20, 1
      %p49 = por %p47, %p48
      %p50 = scmp.ne.s32.totalorder %s42, %s45
      %p51 = scmp.eq.s32.totalorder %s20, 0
      %p52 = por %p50, %p51
      %p53 = scmp.ne.s32.totalorder %s42, %s45
      %p54 = scmp.eq.s32.totalorder %s25, 1
      %p55 = por %p53, %p54
      %p56 = scmp.ne.s32.totalorder %s45, %s46
      %p57 = scmp.eq.s32.totalorder %s25, 0
      %p58 = por %p56, %p57
      %p59 = scmp.ne.s32.totalorder %s45, %s46
      %p60 = scmp.eq.s32.totalorder %s26, 1
      %p61 = por %p59, %p60
      %p63 = scmp.ne.s32.totalorder %s46, %s62
      %p64 = scmp.eq.s32.totalorder %s26, 0
      %p65 = por %p63, %p64
      %s66 = ssub.s32 %s27, %s39
      %s67 = ssub.s32 %s28, %s35
      %s68 = sor.u32 %s66, %s67
      %p69 = scmp.eq.s32.totalorder %s68, 0
      %s71 = sadd.s32 %s70, 1
      %s72 = scalar_select %p69, %s70, %s71
      %p75 = pneg %p69
      %p76 = scmp.eq.s32.totalorder %s20, 1
      %p77 = por %p75, %p76
      %p78 = scmp.ne.s32.totalorder %s70, %s73
      %p79 = scmp.eq.s32.totalorder %s20, 0
      %p80 = por %p78, %p79
      %p81 = scmp.ne.s32.totalorder %s70, %s73
      %p82 = scmp.eq.s32.totalorder %s25, 1
      %p83 = por %p81, %p82
      %p84 = scmp.ne.s32.totalorder %s73, %s74
      %p85 = scmp.eq.s32.totalorder %s25, 0
      %p86 = por %p84, %p85
      %p87 = scmp.ne.s32.totalorder %s73, %s74
      %p88 = scmp.eq.s32.totalorder %s26, 1
      %p89 = por %p87, %p88
      %p91 = scmp.ne.s32.totalorder %s74, %s90
      %p92 = scmp.eq.s32.totalorder %s26, 0
      %p93 = por %p91, %p92
      %s95 = sadd.s32 %s94, 1
      %p98 = scmp.eq.s32.totalorder %s20, 1
      %p99 = scmp.ne.s32.totalorder %s94, %s96
      %p100 = scmp.eq.s32.totalorder %s20, 0
      %p101 = por %p99, %p100
      %p102 = scmp.ne.s32.totalorder %s94, %s96
      %p103 = scmp.eq.s32.totalorder %s25, 1
      %p104 = por %p102, %p103
      %p105 = scmp.ne.s32.totalorder %s96, %s97
      %p106 = scmp.eq.s32.totalorder %s25, 0
      %p107 = por %p105, %p106
      %p108 = scmp.ne.s32.totalorder %s96, %s97
      %p109 = scmp.eq.s32.totalorder %s26, 1
      %p110 = por %p108, %p109
      %p112 = scmp.ne.s32.totalorder %s97, %s111
      %p113 = scmp.eq.s32.totalorder %s26, 0
      %p114 = por %p112, %p113
      %s116 = sadd.s32 %s115, 1
      %p119 = scmp.eq.s32.totalorder %s20, 1
      %p120 = scmp.ne.s32.totalorder %s115, %s117
      %p121 = scmp.eq.s32.totalorder %s20, 0
      %p122 = por %p120, %p121
      %p123 = scmp.ne.s32.totalorder %s115, %s117
      %p124 = scmp.eq.s32.totalorder %s25, 1
      %p125 = por %p123, %p124
      %p126 = scmp.ne.s32.totalorder %s117, %s118
      %p127 = scmp.eq.s32.totalorder %s25, 0
      %p128 = por %p126, %p127
      %p129 = scmp.ne.s32.totalorder %s117, %s118
      %p130 = scmp.eq.s32.totalorder %s26, 1
      %p131 = por %p129, %p130
      %p133 = scmp.ne.s32.totalorder %s118, %s132
      %p134 = scmp.eq.s32.totalorder %s26, 0
      %p135 = por %p133, %p134
      %s136 = ssub.s32 %s27, %s39
      %p137 = scmp.eq.s32.totalorder %s136, 0
      %s139 = sadd.s32 %s138, 1
      %s140 = scalar_select %p137, %s138, %s139
      %p143 = pneg %p137
      %p144 = scmp.eq.s32.totalorder %s20, 1
      %p145 = por %p143, %p144
      %p146 = scmp.ne.s32.totalorder %s138, %s141
      %p147 = scmp.eq.s32.totalorder %s20, 0
      %p148 = por %p146, %p147
      %p149 = scmp.ne.s32.totalorder %s138, %s141
      %p150 = scmp.eq.s32.totalorder %s25, 1
      %p151 = por %p149, %p150
      %p152 = scmp.ne.s32.totalorder %s141, %s142
      %p153 = scmp.eq.s32.totalorder %s25, 0
      %p154 = por %p152, %p153
      %p155 = scmp.ne.s32.totalorder %s141, %s142
      %p156 = scmp.eq.s32.totalorder %s26, 1
      %p157 = por %p155, %p156
      %p159 = scmp.ne.s32.totalorder %s142, %s158
      %p160 = scmp.eq.s32.totalorder %s26, 0
      %p161 = por %p159, %p160
      %p162 = scmp.le.s32.totalorder 1, %s20
      %p163 = scmp.lt.s32.totalorder %s20, 3
      %p164 = pnand %p162, %p163
      %p165 = pneg %p164
      // Predicated region
      $region9: #{tpu_custom_call.1} parent=5 // pred_check
        _
      $region10: #{tpu_custom_call.1} parent=5 // pred_check_branch
        %167 = sbr.rel (%p164) target = $region12
      $region11: #{tpu_custom_call.1} parent=5 // pred_region
        %s168 = ssub.s32 %s20, 1
        // Predicated region
        $region13: #{tpu_custom_call.1} parent=11 // pred_check
          %p169 = pneg %p107
        $region14: #{tpu_custom_call.1} parent=11 // pred_check_branch
          %171 = sbr.rel (%p169) target = $region16
        $region15: #{tpu_custom_call.1} parent=11 // pred_region
          %s173 = ssub.s32 512, 512
          %174 = vsyncadd [#allocation10], %s173
          %s175 = sshll.u32 [#allocation11], 4
          %s176 = int_to_ptr.vmem [resolvable:$true] %s175
          %181 = dma.hbm_to_vmem [thread:$0]  %s2, 512, %s176, [#allocation10], 128, 128, 8
        $region16: #{tpu_custom_call.1} parent=11 // pred_fallthru
          _
        // Predicated region
        $region17: #{tpu_custom_call.1} parent=11 // pred_check
          %p182 = pneg %p128
        $region18: #{tpu_custom_call.1} parent=11 // pred_check_branch
          %184 = sbr.rel (%p182) target = $region20
        $region19: #{tpu_custom_call.1} parent=11 // pred_region
          %s186 = ssub.s32 1024, 1024
          %187 = vsyncadd [#allocation13], %s186
          %s188 = sshll.u32 [#allocation12], 4
          %s189 = int_to_ptr.vmem [resolvable:$true] %s188
          %194 = dma.hbm_to_vmem [thread:$0]  %s3, 1024, %s189, [#allocation13], 256, 256, 16
        $region20: #{tpu_custom_call.1} parent=11 // pred_fallthru
          _
      $region12: #{tpu_custom_call.1} parent=5 // pred_fallthru
        _
      %p195 = scmp.lt.s32.totalorder %s20, 2
      // Predicated region
      $region21: #{tpu_custom_call.1} parent=5 // pred_check
        %p196 = pneg %p195
      $region22: #{tpu_custom_call.1} parent=5 // pred_check_branch
        %198 = sbr.rel (%p196) target = $region24
      $region23: #{tpu_custom_call.1} parent=5 // pred_region
        // Predicated region
        $region25: #{tpu_custom_call.1} parent=23 // pred_check
          %p199 = pneg %p52
        $region26: #{tpu_custom_call.1} parent=23 // pred_check_branch
          %201 = sbr.rel (%p199) target = $region28
        $region27: #{tpu_custom_call.1} parent=23 // pred_region
          %s202 = sand.u32 %s42, 1
          %s203 = scalar_lea.sflag [#allocation7], %s202
          %s204 = sand.u32 %s42, 1
          %s205 = smul.addr %s204, 8
          %s206 = scalar_lea.vmem [#allocation6], %s205
          %s208 = ssub.s32 128, 128
          %209 = vsyncadd %s203, %s208
          %s210 = smul.addr %s27, 128
          %s211 = scalar_lea.hbm %s0, %s210
          %s213 = sshll.u32 %s206, 4
          %s214 = int_to_ptr.vmem [resolvable:$true] %s213
          %216 = dma.hbm_to_vmem [thread:$0]  %s211, 128, %s214, %s203
        $region28: #{tpu_custom_call.1} parent=23 // pred_fallthru
          _
        // Predicated region
        $region29: #{tpu_custom_call.1} parent=23 // pred_check
          %p217 = pneg %p80
        $region30: #{tpu_custom_call.1} parent=23 // pred_check_branch
          %219 = sbr.rel (%p217) target = $region32
        $region31: #{tpu_custom_call.1} parent=23 // pred_region
          %s220 = sand.u32 %s20, 1
          %s221 = scalar_lea.sflag [#allocation10], %s220
          %s222 = sand.u32 %s70, 1
          %s223 = smul.addr %s222, 8
          %s224 = scalar_lea.vmem [#allocation9], %s223
          %s226 = ssub.s32 128, 128
          %227 = vsyncadd %s221, %s226
          %s228 = sadd.s32 %s28, %s27
          %s229 = smul.addr %s228, 128
          %s230 = scalar_lea.hbm %s1, %s229
          %s232 = sshll.u32 %s224, 4
          %s233 = int_to_ptr.vmem [resolvable:$true] %s232
          %235 = dma.hbm_to_vmem [thread:$0]  %s230, 128, %s233, %s221
        $region32: #{tpu_custom_call.1} parent=23 // pred_fallthru
          _
      $region24: #{tpu_custom_call.1} parent=5 // pred_fallthru
        _
      %p236 = scmp.le.s32.totalorder 1, %s20
      %p237 = scmp.lt.s32.totalorder %s20, 3
      %p238 = pnand %p236, %p237
      %p239 = pneg %p238
      // Predicated region
      $region33: #{tpu_custom_call.1} parent=5 // pred_check
        _
      $region34: #{tpu_custom_call.1} parent=5 // pred_check_branch
        %241 = sbr.rel (%p238) target = $region36
      $region35: #{tpu_custom_call.1} parent=5 // pred_region
        %s242 = ssub.s32 %s20, 1
        %s243 = sand.u32 %s45, 1
        %s244 = scalar_lea.sflag [#allocation7], %s243
        %s245 = sand.u32 %s45, 1
        %s246 = smul.addr %s245, 8
        %s247 = scalar_lea.vmem [#allocation6], %s246
        // Predicated region
        $region37: #{tpu_custom_call.1} parent=35 // pred_check
          %p248 = pneg %p58
        $region38: #{tpu_custom_call.1} parent=35 // pred_check_branch
          %250 = sbr.rel (%p248) target = $region40
        $region39: #{tpu_custom_call.1} parent=35 // pred_region
          %251 = dma.done %s244, 128
        $region40: #{tpu_custom_call.1} parent=35 // pred_fallthru
          _
        %s252 = sand.u32 %s25, 1
        %s253 = scalar_lea.sflag [#allocation10], %s252
        %s254 = sand.u32 %s73, 1
        %s255 = smul.addr %s254, 8
        %s256 = scalar_lea.vmem [#allocation9], %s255
        // Predicated region
        $region41: #{tpu_custom_call.1} parent=35 // pred_check
          %p257 = pneg %p86
        $region42: #{tpu_custom_call.1} parent=35 // pred_check_branch
          %259 = sbr.rel (%p257) target = $region44
        $region43: #{tpu_custom_call.1} parent=35 // pred_region
          %260 = dma.done %s253, 128
        $region44: #{tpu_custom_call.1} parent=35 // pred_fallthru
          _
        // Predicated region
        $region45: #{tpu_custom_call.1} parent=35 // pred_check
          %p261 = pneg %p107
        $region46: #{tpu_custom_call.1} parent=35 // pred_check_branch
          %263 = sbr.rel (%p261) target = $region48
        $region47: #{tpu_custom_call.1} parent=35 // pred_region
          %264 = dma.done [#allocation10], 512
        $region48: #{tpu_custom_call.1} parent=35 // pred_fallthru
          _
        // Predicated region
        $region49: #{tpu_custom_call.1} parent=35 // pred_check
          %p265 = pneg %p128
        $region50: #{tpu_custom_call.1} parent=35 // pred_check_branch
          %267 = sbr.rel (%p265) target = $region52
        $region51: #{tpu_custom_call.1} parent=35 // pred_region
          %268 = dma.done [#allocation13], 1024
        $region52: #{tpu_custom_call.1} parent=35 // pred_fallthru
          _
        %s269 = sand.u32 %s45, 1
        %s270 = scalar_lea.sflag [#allocation7], %s269
        %s271 = sand.u32 %s45, 1
        %s272 = smul.addr %s271, 8
        %s273 = scalar_lea.vmem [#allocation6], %s272
        %p274 = pneg %p58
        %p275 = pneg %p55
        %s276 = sand.u32 %s25, 1
        %s277 = scalar_lea.sflag [#allocation10], %s276
        %s278 = sand.u32 %s73, 1
        %s279 = smul.addr %s278, 8
        %s280 = scalar_lea.vmem [#allocation9], %s279
        %p281 = pneg %p86
        %p282 = pneg %p83
        %p283 = pneg %p107
        %p284 = pneg %p104
        %p285 = pneg %p128
        %p286 = pneg %p125
        %p287 = pneg %p154
        %p288 = pneg %p151
        %s289 = sand.u32 %s141, 1
        %s290 = scalar_lea.sflag [#allocation8], %s289
        %s291 = sand.u32 %s141, 1
        %s292 = smul.addr %s291, 8
        %s293 = scalar_lea.vmem [#allocation14], %s292
        %p294 = scmp.eq.s32.totalorder %s30, 0
        // Predicated region
        $region53: #{tpu_custom_call.1} parent=35 // pred_check
          %p295 = pneg %p294
        $region54: #{tpu_custom_call.1} parent=35 // pred_check_branch
          %297 = sbr.rel (%p295) target = $region56
        $region55: #{tpu_custom_call.1} parent=35 // pred_region
          %v298 = vld [vmem:[%s247] sm:$0xff]
          %v299 = vld [vmem:[#allocation11] sm:$0xff]
          %v300 = vld [vmem:[#allocation11 + $0x8] sm:$0xff]
          %v301 = vld [vmem:[#allocation11 + $0x10] sm:$0xff]
          %v302 = vld [vmem:[#allocation11 + $0x18] sm:$0xff]
          %vm303 = vcmask 261120
          %v305 = vsel %vm303, %v298, 0
          %307 = vmatprep.subr.mxu0 0.0
          %308 = vmatpush1.msra.mxu0 %v299
          %309 = vmatprep.subr.mxu0 0.0
          %310 = vmatpush1.msra.mxu0 %v300
          %311 = vmatprep.subr.mxu0 0.0
          %312 = vmatpush1.msra.mxu0 %v301
          %313 = vmatprep.subr.mxu0 0.0
          %314 = vmatpush1.msra.mxu0 %v302
          %315 = vmatprep.subr.mxu0 0.0
          %316 = vmatpush1.msra.mxu0 0.0
          %317 = vmatprep.subr.mxu0 0.0
          %318 = vmatpush1.msra.mxu0 0.0
          %319 = vmatprep.subr.mxu0 0.0
          %320 = vmatpush1.msra.mxu0 0.0
          %321 = vmatprep.subr.mxu0 0.0
          %322 = vmatpush1.msra.mxu0 0.0
          %323 = vmatprep.subr.mxu0 0.0
          %324 = vmatpush1.msra.mxu0 0.0
          %325 = vmatprep.subr.mxu0 0.0
          %326 = vmatpush1.msra.mxu0 0.0
          %327 = vmatprep.subr.mxu0 0.0
          %328 = vmatpush1.msra.mxu0 0.0
          %329 = vmatprep.subr.mxu0 0.0
          %330 = vmatpush1.msra.mxu0 0.0
          %331 = vmatprep.subr.mxu0 0.0
          %332 = vmatpush1.msra.mxu0 0.0
          %333 = vmatprep.subr.mxu0 0.0
          %334 = vmatpush1.msra.mxu0 0.0
          %335 = vmatprep.subr.mxu0 0.0
          %336 = vmatpush1.msra.mxu0 0.0
          %337 = vmatprep.subr.mxu0 0.0
          %338 = vmatpush1.msra.mxu0 0.0
          %339 = vmatprep.subr.mxu0 0.0
          %340 = vmatpush1.msra.mxu0 0.0
          %341 = vmatprep.subr.mxu0 0.0
          %342 = vmatpush1.msra.mxu0 0.0
          %343 = vmatprep.subr.mxu0 0.0
          %344 = vmatpush1.msra.mxu0 0.0
          %345 = vmatprep.subr.mxu0 0.0
          %346 = vmatpush1.msra.mxu0 0.0
          %347 = vmatprep.subr.mxu0 0.0
          %348 = vmatpush1.msra.mxu0 0.0
          %349 = vmatprep.subr.mxu0 0.0
          %350 = vmatpush1.msra.mxu0 0.0
          %351 = vmatprep.subr.mxu0 0.0
          %352 = vmatpush1.msra.mxu0 0.0
          %353 = vmatprep.subr.mxu0 0.0
          %354 = vmatpush1.msra.mxu0 0.0
          %355 = vmatprep.subr.mxu0 0.0
          %356 = vmatpush1.msra.mxu0 0.0
          %357 = vmatprep.subr.mxu0 0.0
          %358 = vmatpush1.msra.mxu0 0.0
          %359 = vmatprep.subr.mxu0 0.0
          %360 = vmatpush1.msra.mxu0 0.0
          %361 = vmatprep.subr.mxu0 0.0
          %362 = vmatpush1.msra.mxu0 0.0
          %363 = vmatprep.subr.mxu0 0.0
          %364 = vmatpush1.msra.mxu0 0.0
          %365 = vmatprep.subr.mxu0 0.0
          %366 = vmatpush1.msra.mxu0 0.0
          %367 = vmatprep.subr.mxu0 0.0
          %368 = vmatpush1.msra.mxu0 0.0
          %369 = vmatprep.subr.mxu0 0.0
          %370 = vmatpush1.msra.mxu0 0.0
          %371 = vmatprep.mubr.f32.mxu0 0.0
          %372 = vmatmul.mubr.f32.gmra.mrb[0].mxu0 %v305
          %v373 = vpop.f32.mrb[0].mxu0
          %v374 = vadd.f32 0.0, %v373
          %v375 = vpop.f32.mrb[0].mxu0
          %376 = vdwg.mxu0
          %377 = vst [vmem:[#allocation2] sm:$0xff] %v374
          %vm378 = vcmask 7168
          %379 = vst.msk [vmem:[#allocation3] sm:$0xff] %vm378, -inf
          %380 = vst.msk [vmem:[#allocation4] sm:$0xff] %vm378, 0.0
          %381 = vst [vmem:[#allocation5] sm:$0xff] 0.0
        $region56: #{tpu_custom_call.1} parent=35 // pred_fallthru
          _
        %v382 = vld [vmem:[%s256] sm:$0xff]
        %v383 = vld [vmem:[#allocation12] sm:$0xff]
        %v384 = vld [vmem:[#allocation12 + $0x8] sm:$0xff]
        %v385 = vld [vmem:[#allocation12 + $0x10] sm:$0xff]
        %v386 = vld [vmem:[#allocation12 + $0x18] sm:$0xff]
        %v387 = vld [vmem:[#allocation12 + $0x20] sm:$0xff]
        %v388 = vld [vmem:[#allocation12 + $0x28] sm:$0xff]
        %v389 = vld [vmem:[#allocation12 + $0x30] sm:$0xff]
        %v390 = vld [vmem:[#allocation12 + $0x38] sm:$0xff]
        %vm391 = vcmask 261120
        %v393 = vsel %vm391, %v382, 0
        %395 = vmatprep.subr.mxu0 %v384
        %396 = vmatpush1.msra.mxu0 %v383
        %397 = vmatprep.subr.mxu0 %v386
        %398 = vmatpush1.msra.mxu0 %v385
        %399 = vmatprep.subr.mxu0 %v388
        %400 = vmatpush1.msra.mxu0 %v387
        %401 = vmatprep.subr.mxu0 %v390
        %402 = vmatpush1.msra.mxu0 %v389
        %403 = vmatprep.subr.mxu0 0.0
        %404 = vmatpush1.msra.mxu0 0.0
        %405 = vmatprep.subr.mxu0 0.0
        %406 = vmatpush1.msra.mxu0 0.0
        %407 = vmatprep.subr.mxu0 0.0
        %408 = vmatpush1.msra.mxu0 0.0
        %409 = vmatprep.subr.mxu0 0.0
        %410 = vmatpush1.msra.mxu0 0.0
        %411 = vmatprep.subr.mxu0 0.0
        %412 = vmatpush1.msra.mxu0 0.0
        %413 = vmatprep.subr.mxu0 0.0
        %414 = vmatpush1.msra.mxu0 0.0
        %415 = vmatprep.subr.mxu0 0.0
        %416 = vmatpush1.msra.mxu0 0.0
        %417 = vmatprep.subr.mxu0 0.0
        %418 = vmatpush1.msra.mxu0 0.0
        %419 = vmatprep.subr.mxu0 0.0
        %420 = vmatpush1.msra.mxu0 0.0
        %421 = vmatprep.subr.mxu0 0.0
        %422 = vmatpush1.msra.mxu0 0.0
        %423 = vmatprep.subr.mxu0 0.0
        %424 = vmatpush1.msra.mxu0 0.0
        %425 = vmatprep.subr.mxu0 0.0
        %426 = vmatpush1.msra.mxu0 0.0
        %427 = vmatprep.subr.mxu0 0.0
        %428 = vmatpush1.msra.mxu0 0.0
        %429 = vmatprep.subr.mxu0 0.0
        %430 = vmatpush1.msra.mxu0 0.0
        %431 = vmatprep.subr.mxu0 0.0
        %432 = vmatpush1.msra.mxu0 0.0
        %433 = vmatprep.subr.mxu0 0.0
        %434 = vmatpush1.msra.mxu0 0.0
        %435 = vmatprep.subr.mxu0 0.0
        %436 = vmatpush1.msra.mxu0 0.0
        %437 = vmatprep.subr.mxu0 0.0
        %438 = vmatpush1.msra.mxu0 0.0
        %439 = vmatprep.subr.mxu0 0.0
        %440 = vmatpush1.msra.mxu0 0.0
        %441 = vmatprep.subr.mxu0 0.0
        %442 = vmatpush1.msra.mxu0 0.0
        %443 = vmatprep.subr.mxu0 0.0
        %444 = vmatpush1.msra.mxu0 0.0
        %445 = vmatprep.subr.mxu0 0.0
        %446 = vmatpush1.msra.mxu0 0.0
        %447 = vmatprep.subr.mxu0 0.0
        %448 = vmatpush1.msra.mxu0 0.0
        %449 = vmatprep.subr.mxu0 0.0
        %450 = vmatpush1.msra.mxu0 0.0
        %451 = vmatprep.subr.mxu0 0.0
        %452 = vmatpush1.msra.mxu0 0.0
        %453 = vmatprep.subr.mxu0 0.0
        %454 = vmatpush1.msra.mxu0 0.0
        %455 = vmatprep.subr.mxu0 0.0
        %456 = vmatpush1.msra.mxu0 0.0
        %457 = vmatprep.subr.mxu0 0.0
        %458 = vmatpush1.msra.mxu0 0.0
        %459 = vmatprep.mubr.f32.mxu0 0.0
        %460 = vmatmul.mubr.f32.gmra.mrb[0].mxu0 %v393
        %v461 = vpop.f32.mrb[0].mxu0
        %v462 = vadd.f32 0.0, %v461
        %v463 = vpop.f32.mrb[0].mxu0
        %v464 = vadd.f32 0.0, %v463
        %465 = vdwg.mxu0
        %v466 = vld [vmem:[#allocation2] sm:$0xff]
        %467 = vmatprep.subr.mxu0 0.0
        %468 = vmatpush1.xpose.msra.mxu0 %v462
        %469 = vmatprep.subr.mxu0 0.0
        %470 = vmatpush1.xpose.msra.mxu0 0.0
        %471 = vmatprep.subr.mxu0 0.0
        %472 = vmatpush1.xpose.msra.mxu0 0.0
        %473 = vmatprep.subr.mxu0 0.0
        %474 = vmatpush1.xpose.msra.mxu0 0.0
        %475 = vmatprep.subr.mxu0 0.0
        %476 = vmatpush1.xpose.msra.mxu0 0.0
        %477 = vmatprep.subr.mxu0 0.0
        %478 = vmatpush1.xpose.msra.mxu0 0.0
        %479 = vmatprep.subr.mxu0 0.0
        %480 = vmatpush1.xpose.msra.mxu0 0.0
        %481 = vmatprep.subr.mxu0 0.0
        %482 = vmatpush1.xpose.msra.mxu0 0.0
        %483 = vmatprep.subr.mxu0 0.0
        %484 = vmatpush1.xpose.msra.mxu0 0.0
        %485 = vmatprep.subr.mxu0 0.0
        %486 = vmatpush1.xpose.msra.mxu0 0.0
        %487 = vmatprep.subr.mxu0 0.0
        %488 = vmatpush1.xpose.msra.mxu0 0.0
        %489 = vmatprep.subr.mxu0 0.0
        %490 = vmatpush1.xpose.msra.mxu0 0.0
        %491 = vmatprep.subr.mxu0 0.0
        %492 = vmatpush1.xpose.msra.mxu0 0.0
        %493 = vmatprep.subr.mxu0 0.0
        %494 = vmatpush1.xpose.msra.mxu0 0.0
        %495 = vmatprep.subr.mxu0 0.0
        %496 = vmatpush1.xpose.msra.mxu0 0.0
        %497 = vmatprep.subr.mxu0 0.0
        %498 = vmatpush1.xpose.msra.mxu0 0.0
        %499 = vmatprep.subr.mxu0 0.0
        %500 = vmatpush1.xpose.msra.mxu0 0.0
        %501 = vmatprep.subr.mxu0 0.0
        %502 = vmatpush1.xpose.msra.mxu0 0.0
        %503 = vmatprep.subr.mxu0 0.0
        %504 = vmatpush1.xpose.msra.mxu0 0.0
        %505 = vmatprep.subr.mxu0 0.0
        %506 = vmatpush1.xpose.msra.mxu0 0.0
        %507 = vmatprep.subr.mxu0 0.0
        %508 = vmatpush1.xpose.msra.mxu0 0.0
        %509 = vmatprep.subr.mxu0 0.0
        %510 = vmatpush1.xpose.msra.mxu0 0.0
        %511 = vmatprep.subr.mxu0 0.0
        %512 = vmatpush1.xpose.msra.mxu0 0.0
        %513 = vmatprep.subr.mxu0 0.0
        %514 = vmatpush1.xpose.msra.mxu0 0.0
        %515 = vmatprep.subr.mxu0 0.0
        %516 = vmatpush1.xpose.msra.mxu0 0.0
        %517 = vmatprep.subr.mxu0 0.0
        %518 = vmatpush1.xpose.msra.mxu0 0.0
        %519 = vmatprep.subr.mxu0 0.0
        %520 = vmatpush1.xpose.msra.mxu0 0.0
        %521 = vmatprep.subr.mxu0 0.0
        %522 = vmatpush1.xpose.msra.mxu0 0.0
        %523 = vmatprep.subr.mxu0 0.0
        %524 = vmatpush1.xpose.msra.mxu0 0.0
        %525 = vmatprep.subr.mxu0 0.0
        %526 = vmatpush1.xpose.msra.mxu0 0.0
        %527 = vmatprep.subr.mxu0 0.0
        %528 = vmatpush1.xpose.msra.mxu0 0.0
        %529 = vmatprep.subr.mxu0 0.0
        %530 = vmatpush1.xpose.msra.mxu0 0.0
        %531 = vmatprep.mubr.f32.mxu0 0.0
        %532 = vmatmul.mubr.f32.gmra.mrb[0].mxu0 %v466
        %v533 = vpop.f32.mrb[0].mxu0
        %v534 = vadd.f32 0.0, %v533
        %v535 = vpop.f32.mrb[0].mxu0
        %536 = vdwg.mxu0
        %v537 = vld [vmem:[#allocation3] sm:$0xff]
        %vm538 = vcmask 64512
        %v539 = vsel %vm538, %v534, -inf
        %540 = vmax.xlane.f32.xlu0 %v539
        %v541 = vpop.xlane.xlu0 %540
        %v542 = vmax.f32 %v537, %v541
        %v543 = vsub.f32 %v537, %v542
        %v544 = vmul.f32 %v543, 1.442695
        %v545 = vpow.pop %v544
        %547 = vset.pattern.permute.xlu0 0
        %548 = vperm.xlu0 %547, %v542
        %v549 = vpop.permute.xlu0 %548
        %v551 = vsub.f32 %v534, %v549
        %v552 = vmul.f32 %v551, 1.442695
        %v553 = vpow.pop %v552
        %v554 = vld [vmem:[#allocation4] sm:$0xff]
        %v555 = vmul.f32 %v545, %v554
        %v556 = vsel %vm538, %v553, 0.0
        %557 = vadd.xlane.f32.xlu0 %v556
        %v558 = vpop.xlane.xlu0 %557
        %v559 = vadd.f32 %v555, %v558
        %vm560 = vcmask 7168
        %561 = vst.msk [vmem:[#allocation4] sm:$0xff] %vm560, %v559
        %v562 = vld [vmem:[#allocation5] sm:$0xff]
        %564 = vset.pattern.permute.xlu0 0
        %565 = vperm.xlu0 %564, %v545
        %v566 = vpop.permute.xlu0 %565
        %v568 = vmul.f32 %v566, %v562
        %v570 = vsel %vm538, %v553, 0
        %572 = vmatprep.subr.mxu0 0.0
        %573 = vmatpush1.msra.mxu0 %v464
        %574 = vmatprep.subr.mxu0 0.0
        %575 = vmatpush1.msra.mxu0 0.0
        %576 = vmatprep.subr.mxu0 0.0
        %577 = vmatpush1.msra.mxu0 0.0
        %578 = vmatprep.subr.mxu0 0.0
        %579 = vmatpush1.msra.mxu0 0.0
        %580 = vmatprep.subr.mxu0 0.0
        %581 = vmatpush1.msra.mxu0 0.0
        %582 = vmatprep.subr.mxu0 0.0
        %583 = vmatpush1.msra.mxu0 0.0
        %584 = vmatprep.subr.mxu0 0.0
        %585 = vmatpush1.msra.mxu0 0.0
        %586 = vmatprep.subr.mxu0 0.0
        %587 = vmatpush1.msra.mxu0 0.0
        %588 = vmatprep.subr.mxu0 0.0
        %589 = vmatpush1.msra.mxu0 0.0
        %590 = vmatprep.subr.mxu0 0.0
        %591 = vmatpush1.msra.mxu0 0.0
        %592 = vmatprep.subr.mxu0 0.0
        %593 = vmatpush1.msra.mxu0 0.0
        %594 = vmatprep.subr.mxu0 0.0
        %595 = vmatpush1.msra.mxu0 0.0
        %596 = vmatprep.subr.mxu0 0.0
        %597 = vmatpush1.msra.mxu0 0.0
        %598 = vmatprep.subr.mxu0 0.0
        %599 = vmatpush1.msra.mxu0 0.0
        %600 = vmatprep.subr.mxu0 0.0
        %601 = vmatpush1.msra.mxu0 0.0
        %602 = vmatprep.subr.mxu0 0.0
        %603 = vmatpush1.msra.mxu0 0.0
        %604 = vmatprep.subr.mxu0 0.0
        %605 = vmatpush1.msra.mxu0 0.0
        %606 = vmatprep.subr.mxu0 0.0
        %607 = vmatpush1.msra.mxu0 0.0
        %608 = vmatprep.subr.mxu0 0.0
        %609 = vmatpush1.msra.mxu0 0.0
        %610 = vmatprep.subr.mxu0 0.0
        %611 = vmatpush1.msra.mxu0 0.0
        %612 = vmatprep.subr.mxu0 0.0
        %613 = vmatpush1.msra.mxu0 0.0
        %614 = vmatprep.subr.mxu0 0.0
        %615 = vmatpush1.msra.mxu0 0.0
        %616 = vmatprep.subr.mxu0 0.0
        %617 = vmatpush1.msra.mxu0 0.0
        %618 = vmatprep.subr.mxu0 0.0
        %619 = vmatpush1.msra.mxu0 0.0
        %620 = vmatprep.subr.mxu0 0.0
        %621 = vmatpush1.msra.mxu0 0.0
        %622 = vmatprep.subr.mxu0 0.0
        %623 = vmatpush1.msra.mxu0 0.0
        %624 = vmatprep.subr.mxu0 0.0
        %625 = vmatpush1.msra.mxu0 0.0
        %626 = vmatprep.subr.mxu0 0.0
        %627 = vmatpush1.msra.mxu0 0.0
        %628 = vmatprep.subr.mxu0 0.0
        %629 = vmatpush1.msra.mxu0 0.0
        %630 = vmatprep.subr.mxu0 0.0
        %631 = vmatpush1.msra.mxu0 0.0
        %632 = vmatprep.subr.mxu0 0.0
        %633 = vmatpush1.msra.mxu0 0.0
        %634 = vmatprep.subr.mxu0 0.0
        %635 = vmatpush1.msra.mxu0 0.0
        %636 = vmatprep.mubr.f32.mxu0 0.0
        %637 = vmatmul.mubr.f32.gmra.mrb[0].mxu0 %v570
        %v638 = vpop.f32.mrb[0].mxu0
        %v639 = vadd.f32 0.0, %v638
        %v640 = vpop.f32.mrb[0].mxu0
        %641 = vdwg.mxu0
        %v642 = vadd.f32 %v568, %v639
        %643 = vst [vmem:[#allocation5] sm:$0xff] %v642
        %644 = vst.msk [vmem:[#allocation3] sm:$0xff] %vm560, %v542
        // Predicated region
        $region57: #{tpu_custom_call.1} parent=35 // pred_check
          %p645 = pneg %p294
        $region58: #{tpu_custom_call.1} parent=35 // pred_check_branch
          %647 = sbr.rel (%p645) target = $region60
        $region59: #{tpu_custom_call.1} parent=35 // pred_region
          %v648 = vld [vmem:[#allocation4] sm:$0xff]
          %v649 = vrcp.pop %v648
          %v650 = vld [vmem:[#allocation5] sm:$0xff]
          %652 = vset.pattern.permute.xlu0 0
          %653 = vperm.xlu0 %652, %v649
          %v654 = vpop.permute.xlu0 %653
          %v656 = vmul.f32 %v650, %v654
          %657 = vst [vmem:[%s293] sm:$0xff] %v656
        $region60: #{tpu_custom_call.1} parent=35 // pred_fallthru
          _
        %s658 = sand.u32 %s141, 1
        %s659 = scalar_lea.sflag [#allocation8], %s658
        %s660 = sand.u32 %s141, 1
        %s661 = smul.addr %s660, 8
        %s662 = scalar_lea.vmem [#allocation14], %s661
        // Predicated region
        $region61: #{tpu_custom_call.1} parent=35 // pred_check
          %p663 = pneg %p151
        $region62: #{tpu_custom_call.1} parent=35 // pred_check_branch
          %665 = sbr.rel (%p663) target = $region64
        $region63: #{tpu_custom_call.1} parent=35 // pred_region
          %s667 = ssub.s32 128, 128
          %668 = vsyncadd %s659, %s667
          %s669 = smul.addr %s29, 128
          %s670 = scalar_lea.hbm %s4, %s669
          %s672 = sshll.u32 %s662, 4
          %s673 = int_to_ptr.vmem [resolvable:$true] %s672
          %675 = dma.vmem_to_hbm [thread:$0]  %s673, 128, %s670, %s659
        $region64: #{tpu_custom_call.1} parent=35 // pred_fallthru
          _
      $region36: #{tpu_custom_call.1} parent=5 // pred_fallthru
        _
      %p676 = scmp.le.s32.totalorder 2, %s20
      // Predicated region
      $region65: #{tpu_custom_call.1} parent=5 // pred_check
        %p677 = pneg %p676
      $region66: #{tpu_custom_call.1} parent=5 // pred_check_branch
        %679 = sbr.rel (%p677) target = $region68
      $region67: #{tpu_custom_call.1} parent=5 // pred_region
        %s680 = ssub.s32 %s20, 2
        // Predicated region
        $region69: #{tpu_custom_call.1} parent=67 // pred_check
          %p681 = pneg %p157
        $region70: #{tpu_custom_call.1} parent=67 // pred_check_branch
          %683 = sbr.rel (%p681) target = $region72
        $region71: #{tpu_custom_call.1} parent=67 // pred_region
          %s684 = sand.u32 %s142, 1
          %s685 = scalar_lea.sflag [#allocation8], %s684
          %s686 = sand.u32 %s142, 1
          %s687 = smul.addr %s686, 8
          %s688 = scalar_lea.vmem [#allocation14], %s687
          %689 = dma.done %s685, 128
        $region72: #{tpu_custom_call.1} parent=67 // pred_fallthru
          _
      $region68: #{tpu_custom_call.1} parent=5 // pred_fallthru
        _
    $region6: #{tpu_custom_call.1} parent=1 // loop_footer
      %s24 = sadd.s32 1, %s20
    $region7: #{tpu_custom_call.1} parent=1 // loop_footer_branch
      %19 = sbr.rel target = $region3
    $region8: #{tpu_custom_call.1} parent=1 // loop_exit
      _
    %690 = vsyncpa [#allocation7], 1
    %s691 = scalar_lea.sflag [#allocation7], 1
    %692 = vsyncpa %s691, 1
    %693 = vsyncpa [#allocation10], 1
    %s694 = scalar_lea.sflag [#allocation10], 1
    %695 = vsyncpa %s694, 1
    %696 = vsyncpa [#allocation13], 1
    %697 = vsyncpa [#allocation8], 1
    %s698 = scalar_lea.sflag [#allocation8], 1
    %699 = vsyncpa %s698, 1

</llo_original>
